<compile_context>
chip_gen: v7x
topology: tpu7x:2x2x1
jax: 0.10.0
libtpu: 0.0.40
codegen_flags: <defaults>
</compile_context>

<pallas_src>
import jax
import jax.numpy as jnp
from jax.experimental import pallas as pl
from jax.experimental.pallas import tpu as pltpu


def _vardrop_kernel(mask_ref, x_ref, o_ref):
    # mask_ref: (1, H)  -- dropout mask for this batch row, pre-scaled by
    #                      1/keep_prob and cast to x.dtype.
    # x_ref/o_ref: (tT, H) -- current (batch row, time tile).
    # Same mask sublane-broadcast over every timestep of the tile.
    o_ref[...] = x_ref[...] * mask_ref[...]


def _sublane_multiple(dtype):
    """Minimum sublane multiple for the dtype: 8 (f32), 16 (bf16), 32 (int8/fp8)."""
    itemsize = jnp.dtype(dtype).itemsize
    return max(8, 32 // max(1, itemsize))


def _target_block_bytes():
    """Generation-aware block-size target for this HBM-streaming op."""
    vmem = 128 * 1024 * 1024
    try:
        info = pltpu.get_tpu_info()
        vmem = int(getattr(info, "vmem_capacity_bytes", vmem))
    except Exception:
        pass
    if vmem <= 64 * 1024 * 1024:
        # v7x-class: fastest HBM, per-step overhead hurts most -> biggest tiles.
        return 8 * 1024 * 1024
    return 4 * 1024 * 1024


def _choose_time_tile(B, T, H, dtype):
    """Pick a time-tile so one (tT, H) block hits the per-generation byte
    target, rounded to the dtype's sublane multiple, while keeping >= 2
    parallel grid steps when B == 1 (v7x megacore)."""
    itemsize = jnp.dtype(dtype).itemsize
    sub = _sublane_multiple(dtype)
    target = _target_block_bytes()

    tT = max(sub, target // max(1, H * itemsize))
    tT = max(sub, (tT // sub) * sub)
    if tT >= T:
        tT = T  # full dim: always a legal block shape

    # Megacore (v7x has 2 TensorCores): make sure the parallel grid has at
    # least 2 steps.  Only matters when B == 1 and we collapsed tT to T.
    if B * pl.cdiv(T, tT) < 2 and T > sub:
        cand = ((pl.cdiv(T, 2) + sub - 1) // sub) * sub
        if cand < T:
            tT = cand
    return tT


def variational_dropout(x, dropout_prob, key, *, training=True):
    """Apply variational dropout (same mask for all timesteps) to x: (B, T, H)."""
    if (not training) or dropout_prob == 0.0:
        return x

    assert x.ndim == 3, "expected (batch, time, hidden)"
    B, T, H = x.shape
    keep_prob = 1.0 - float(dropout_prob)
    itemsize = jnp.dtype(x.dtype).itemsize

    # Per-(batch, hidden) Bernoulli keep mask, constant over time, scaled by
    # 1/keep_prob -- exactly the PyTorch module's mask.
    keep = jax.random.bernoulli(key, p=keep_prob, shape=(B, 1, H))
    mask = (keep.astype(jnp.float32) * (1.0 / keep_prob)).astype(x.dtype)

    # Lane density: pad hidden to a multiple of 128 so stores are unmasked.
    Hp = ((H + 127) // 128) * 128
    if Hp != H:
        x_in = jnp.pad(x, ((0, 0), (0, 0), (0, Hp - H)))
        mask_in = jnp.pad(mask, ((0, 0), (0, 0), (0, Hp - H)))
    else:
        x_in, mask_in = x, mask

    tT = _choose_time_tile(B, T, Hp, x.dtype)
    grid = (B, pl.cdiv(T, tT))

    # Double-buffered x in + out = 4 blocks, plus the (1, Hp) mask buffers and
    # a little compiler headroom.  Floor keeps tiny-shape compiles comfortable.
    block_bytes = tT * Hp * itemsize
    mask_bytes = Hp * itemsize
    vmem_limit = max(4 * block_bytes + 4 * mask_bytes + (2 << 20), 16 << 20)

    out = pl.pallas_call(
        _vardrop_kernel,
        out_shape=jax.ShapeDtypeStruct((B, T, Hp), x.dtype),
        grid=grid,
        in_specs=[
            # mask: one (1, Hp) row per batch index, reused for every T tile.
            pl.BlockSpec((None, 1, Hp), lambda b, t: (b, 0, 0)),
            # x: (tT, Hp) tile of batch row b (leading batch dim squeezed).
            pl.BlockSpec((None, tT, Hp), lambda b, t: (b, t, 0)),
        ],
        out_specs=pl.BlockSpec((None, tT, Hp), lambda b, t: (b, t, 0)),
        # Output aliases x (input index 1): no extra (B, T, Hp) HBM buffer.
        input_output_aliases={1: 0},
        compiler_params=pltpu.CompilerParams(
            dimension_semantics=("parallel", "parallel"),
            vmem_limit_bytes=int(vmem_limit),
        ),
    )(mask_in, x_in)

    if Hp != H:
        out = out[:, :, :H]
    return out


if __name__ == "__main__":
    # Small shapes consistent with an LM hidden-state tensor: (B, T, H).
    B, T, H = 2, 8, 128
    dropout_prob = 0.3
    keep_prob = 1.0 - dropout_prob

    root = jax.random.PRNGKey(0)
    x_key, mask_key = jax.random.split(root)
    x = jax.random.normal(x_key, (B, T, H), dtype=jnp.float32)

    y = variational_dropout(x, dropout_prob, mask_key, training=True)
    y = jax.block_until_ready(y)

    # Reference (pure JAX) -- same key => same mask.
    keep = jax.random.bernoulli(mask_key, p=keep_prob, shape=(B, 1, H))
    y_ref = x * (keep.astype(x.dtype) / keep_prob)

    # 1) exact match against the reference broadcast-multiply.
    match_ok = jnp.allclose(y, y_ref, atol=1e-6)
    # 2) mask constant across time: per (b, h) the output/x ratio is the same
    #    for every timestep.
    ratio = jnp.where(jnp.abs(x) > 1e-6, y / x, 0.0)
    same_over_time = jnp.allclose(ratio, ratio[:, :1, :], atol=1e-5)
    # 3) kept entries are scaled by exactly 1/(1-p).
    scale = 1.0 / keep_prob
    nz = jnp.abs(ratio) > 1e-6
    scaled_ok = jnp.allclose(jnp.where(nz, ratio, scale), scale, atol=1e-4)
    # 4) eval mode is identity.
    y_eval = variational_dropout(x, dropout_prob, mask_key, training=False)
    eval_ok = jnp.array_equal(y_eval, x)

    assert bool(match_ok), "kernel output differs from reference x * mask"
    assert bool(same_over_time), "mask not constant across timesteps"
    assert bool(scaled_ok), "kept elements not scaled by 1/(1-p)"
    assert bool(eval_ok), "eval mode must be identity"

    print("KERNEL_OK")
</pallas_src>

<mosaic_0001>
module attributes {stable_mosaic.version = 11 : i64} {
  func.func @_vardrop_kernel(%arg0: i32, %arg1: i32, %arg2: memref<1x1x128xf32, #tpu.memory_space<vmem>>, %arg3: memref<1x8x128xf32, #tpu.memory_space<vmem>>, %arg4: memref<1x8x128xf32, #tpu.memory_space<vmem>>) attributes {dimension_semantics = [#tpu.dimension_semantics<parallel>, #tpu.dimension_semantics<parallel>], iteration_bounds = array<i64: 2, 1>, scalar_prefetch = 0 : i64, scratch_operands = 0 : i64, tpu.core_type = #tpu.core_type<tc>, window_params = [{transform_indices = @transform_0, window_bounds = array<i64: 1, 1, 128>}, {transform_indices = @transform_1, window_bounds = array<i64: 1, 8, 128>}, {transform_indices = @transform_2, window_bounds = array<i64: 1, 8, 128>}]} {
    %c0 = arith.constant 0 : index
    %c0_0 = arith.constant 0 : index
    %c0_1 = arith.constant 0 : index
    %0 = vector.load %arg3[%c0, %c0_0, %c0_1] : memref<1x8x128xf32, #tpu.memory_space<vmem>>, vector<1x8x128xf32>
    %1 = vector.shape_cast %0 : vector<1x8x128xf32> to vector<8x128xf32>
    %c0_2 = arith.constant 0 : index
    %c0_3 = arith.constant 0 : index
    %c0_4 = arith.constant 0 : index
    %2 = vector.load %arg2[%c0_2, %c0_3, %c0_4] : memref<1x1x128xf32, #tpu.memory_space<vmem>>, vector<1x1x128xf32>
    %3 = vector.shape_cast %2 : vector<1x1x128xf32> to vector<1x128xf32>
    %4 = vector.broadcast %3 : vector<1x128xf32> to vector<8x128xf32>
    %5 = arith.mulf %1, %4 : vector<8x128xf32>
    %c0_5 = arith.constant 0 : index
    %c0_6 = arith.constant 0 : index
    %c0_7 = arith.constant 0 : index
    %6 = vector.load %arg4[%c0_5, %c0_6, %c0_7] : memref<1x8x128xf32, #tpu.memory_space<vmem>>, vector<1x8x128xf32>
    %7 = vector.shape_cast %6 : vector<1x8x128xf32> to vector<8x128xf32>
    %8 = vector.shape_cast %5 : vector<8x128xf32> to vector<1x8x128xf32>
    tpu.vector_store %arg4[%c0_5, %c0_6, %c0_7], %8 {strides = array<i32>} : memref<1x8x128xf32, #tpu.memory_space<vmem>>, vector<1x8x128xf32>,
    return
  }
  func.func @transform_0(%arg0: i32, %arg1: i32) -> (i32, i32, i32) {
    %c0_i32 = arith.constant 0 : i32
    %c0_i32_0 = arith.constant 0 : i32
    %c0_i32_1 = arith.constant 0 : i32
    return %arg0, %c0_i32, %c0_i32_0 : i32, i32, i32
  }
  func.func @transform_1(%arg0: i32, %arg1: i32) -> (i32, i32, i32) {
    %c0_i32 = arith.constant 0 : i32
    %c0_i32_0 = arith.constant 0 : i32
    return %arg0, %arg1, %c0_i32 : i32, i32, i32
  }
  func.func @transform_2(%arg0: i32, %arg1: i32) -> (i32, i32, i32) {
    %c0_i32 = arith.constant 0 : i32
    %c0_i32_0 = arith.constant 0 : i32
    return %arg0, %arg1, %c0_i32 : i32, i32, i32
  }
}

</mosaic_0001>

<llo_original>
// kernel: tpu_custom_call.1
$region0: #{tpu_custom_call.1}
  #allocation0 [shape = 'u32[]', space=smem, size = 0x4, offset = 0x4, fixed_abs, tag = 'smem constant byte address 0x4 - core index']
  #allocation1 [shape = 'u32[144,128]{1,0:T(1,128)}', space=vmem, size = 0x12000, scoped, tag = 'internal scratch']
  %s0 = inlined_call_operand.vmem [shape: f32[2,1,128], index: 0, kind: input, shape index: {}]
  %s1 = inlined_call_operand.hbm [shape: f32[2,8,128], index: 1, kind: input, shape index: {}, may-alias: {1,2}]
  %s2 = inlined_call_operand.hbm [shape: f32[2,8,128], index: 2, kind: output, shape index: {}, may-alias: {1,2}]
  %s3 = sld [smem:[#allocation0]]
  $region45: #{tpu_custom_call.1} parent=0
    _
  %s5 = ssub.s32 1, %s3
  %s6 = scalar_select 0, %s5, %s3
  $region1: #{tpu_custom_call.1} parent=0
    #allocation2 [shape = 'u8[8192]{0}', space=vmem, size = 0x2000, scoped, tag = 'input window, operand 1']
    #allocation3 [shape = 's32[2]{0}', space=sflag, size = 0x8, scoped, tag = 'scoped memory for tpu_custom_call.1']
    #allocation4 [shape = 's32[2]{0}', space=sflag, size = 0x8, scoped, tag = 'scoped memory for tpu_custom_call.1']
    #allocation5 [shape = 'u8[8192]{0}', space=vmem, size = 0x2000, scoped, tag = 'output window, operand 0']
    %7 = vsyncpa [#allocation3], 0
    %s8 = scalar_lea.sflag [#allocation3], 1
    %9 = vsyncpa %s8, 0
    %10 = vsyncpa [#allocation4], 0
    %s11 = scalar_lea.sflag [#allocation4], 1
    %12 = vsyncpa %s11, 0
    loop: start=0, step=1, limit=4
    $region2: #{tpu_custom_call.1} parent=1 // loop_pre_header
      _
    $region3: #{tpu_custom_call.1} parent=1 // loop_header
      %s14 = sphi 0, %s18
      %p15 = scmp.ge.s32.totalorder %s14, 4
      %s21 = sphi 0, %s33
      %s22 = sphi 0, %s29
      %s23 = sphi 0, %s21
      %s24 = sphi 0, %s22
      %s25 = sphi 0, %s23
      %s26 = sphi 0, %s24
      %s36 = sphi 0, %s38
      %s39 = sphi 0, %s36
      %s40 = sphi 0, %s39
      %s56 = sphi 0, %s40
      %s64 = sphi 0, %s66
      %s67 = sphi 0, %s64
      %s68 = sphi 0, %s67
      %s84 = sphi 0, %s68
      %s92 = sphi 0, %s94
      %s95 = sphi 0, %s92
      %s96 = sphi 0, %s95
      %s112 = sphi 0, %s96
    $region4: #{tpu_custom_call.1} parent=1 // loop_header_branch
      %17 = sbr.rel (%p15) target = $region8
    $region5: #{tpu_custom_call.1} parent=1 // loop_body
      %s19 = ssub.s32 %s14, 1
      %s20 = ssub.s32 %s14, 2
      %s27 = sadd.s32 1, %s22
      %p28 = scmp.ge.s32.totalorder %s27, 1
      %s29 = scalar_select %p28, 0, %s27
      %s30 = sadd.s32 1, %s21
      %s31 = scalar_select %p28, %s30, %s21
      %p32 = scmp.ge.s32.totalorder %s31, 2
      %s33 = scalar_select %p32, 0, %s31
      %s34 = ssub.s32 %s21, %s33
      %p35 = scmp.eq.s32.totalorder %s34, 0
      %s37 = sadd.s32 %s36, 1
      %s38 = scalar_select %p35, %s36, %s37
      %p41 = pneg %p35
      %p42 = scmp.eq.s32.totalorder %s14, 1
      %p43 = por %p41, %p42
      %p44 = scmp.ne.s32.totalorder %s36, %s39
      %p45 = scmp.eq.s32.totalorder %s14, 0
      %p46 = por %p44, %p45
      %p47 = scmp.ne.s32.totalorder %s36, %s39
      %p48 = scmp.eq.s32.totalorder %s19, 1
      %p49 = por %p47, %p48
      %p50 = scmp.ne.s32.totalorder %s39, %s40
      %p51 = scmp.eq.s32.totalorder %s19, 0
      %p52 = por %p50, %p51
      %p53 = scmp.ne.s32.totalorder %s39, %s40
      %p54 = scmp.eq.s32.totalorder %s20, 1
      %p55 = por %p53, %p54
      %p57 = scmp.ne.s32.totalorder %s40, %s56
      %p58 = scmp.eq.s32.totalorder %s20, 0
      %p59 = por %p57, %p58
      %s60 = ssub.s32 %s21, %s33
      %s61 = ssub.s32 %s22, %s29
      %s62 = sor.u32 %s60, %s61
      %p63 = scmp.eq.s32.totalorder %s62, 0
      %s65 = sadd.s32 %s64, 1
      %s66 = scalar_select %p63, %s64, %s65
      %p69 = pneg %p63
      %p70 = scmp.eq.s32.totalorder %s14, 1
      %p71 = por %p69, %p70
      %p72 = scmp.ne.s32.totalorder %s64, %s67
      %p73 = scmp.eq.s32.totalorder %s14, 0
      %p74 = por %p72, %p73
      %p75 = scmp.ne.s32.totalorder %s64, %s67
      %p76 = scmp.eq.s32.totalorder %s19, 1
      %p77 = por %p75, %p76
      %p78 = scmp.ne.s32.totalorder %s67, %s68
      %p79 = scmp.eq.s32.totalorder %s19, 0
      %p80 = por %p78, %p79
      %p81 = scmp.ne.s32.totalorder %s67, %s68
      %p82 = scmp.eq.s32.totalorder %s20, 1
      %p83 = por %p81, %p82
      %p85 = scmp.ne.s32.totalorder %s68, %s84
      %p86 = scmp.eq.s32.totalorder %s20, 0
      %p87 = por %p85, %p86
      %s88 = ssub.s32 %s21, %s33
      %s89 = ssub.s32 %s22, %s29
      %s90 = sor.u32 %s88, %s89
      %p91 = scmp.eq.s32.totalorder %s90, 0
      %s93 = sadd.s32 %s92, 1
      %s94 = scalar_select %p91, %s92, %s93
      %p97 = pneg %p91
      %p98 = scmp.eq.s32.totalorder %s14, 1
      %p99 = por %p97, %p98
      %p100 = scmp.ne.s32.totalorder %s92, %s95
      %p101 = scmp.eq.s32.totalorder %s14, 0
      %p102 = por %p100, %p101
      %p103 = scmp.ne.s32.totalorder %s92, %s95
      %p104 = scmp.eq.s32.totalorder %s19, 1
      %p105 = por %p103, %p104
      %p106 = scmp.ne.s32.totalorder %s95, %s96
      %p107 = scmp.eq.s32.totalorder %s19, 0
      %p108 = por %p106, %p107
      %p109 = scmp.ne.s32.totalorder %s95, %s96
      %p110 = scmp.eq.s32.totalorder %s20, 1
      %p111 = por %p109, %p110
      %p113 = scmp.ne.s32.totalorder %s96, %s112
      %p114 = scmp.eq.s32.totalorder %s20, 0
      %p115 = por %p113, %p114
      %p116 = scmp.le.s32.totalorder 1, %s14
      %p117 = scmp.lt.s32.totalorder %s14, 3
      %p118 = pnand %p116, %p117
      %p119 = pneg %p118
      // Predicated region
      $region9: #{tpu_custom_call.1} parent=5 // pred_check
        _
      $region10: #{tpu_custom_call.1} parent=5 // pred_check_branch
        %121 = sbr.rel (%p118) target = $region12
      $region11: #{tpu_custom_call.1} parent=5 // pred_region
        %s122 = ssub.s32 %s14, 1
      $region12: #{tpu_custom_call.1} parent=5 // pred_fallthru
        _
      %p123 = scmp.lt.s32.totalorder %s14, 2
      // Predicated region
      $region13: #{tpu_custom_call.1} parent=5 // pred_check
        %p124 = pneg %p123
      $region14: #{tpu_custom_call.1} parent=5 // pred_check_branch
        %126 = sbr.rel (%p124) target = $region16
      $region15: #{tpu_custom_call.1} parent=5 // pred_region
        // Predicated region
        $region17: #{tpu_custom_call.1} parent=15 // pred_check
          %p127 = pneg %p46
        $region18: #{tpu_custom_call.1} parent=15 // pred_check_branch
          %129 = sbr.rel (%p127) target = $region20
        $region19: #{tpu_custom_call.1} parent=15 // pred_region
          %p130 = scmp.lt.s32.totalorder %s21, 1
          %s131 = scalar_select %p130, %s21, 1
          %s132 = scalar_lea.vmem %s0, %s131
        $region20: #{tpu_custom_call.1} parent=15 // pred_fallthru
          _
        // Predicated region
        $region21: #{tpu_custom_call.1} parent=15 // pred_check
          %p133 = pneg %p74
        $region22: #{tpu_custom_call.1} parent=15 // pred_check_branch
          %135 = sbr.rel (%p133) target = $region24
        $region23: #{tpu_custom_call.1} parent=15 // pred_region
          %s136 = sand.u32 %s64, 1
          %s137 = scalar_lea.sflag [#allocation3], %s136
          %s138 = sand.u32 %s64, 1
          %s139 = smul.addr %s138, 8
          %s140 = scalar_lea.vmem [#allocation2], %s139
          %s142 = ssub.s32 128, 128
          %143 = vsyncadd %s137, %s142
          %s144 = sadd.s32 %s22, %s21
          %s145 = smul.addr %s144, 128
          %s146 = scalar_lea.hbm %s1, %s145
          %s148 = sshll.u32 %s140, 4
          %s149 = int_to_ptr.vmem [resolvable:$true] %s148
          %151 = dma.hbm_to_vmem [thread:$0]  %s146, 128, %s149, %s137
        $region24: #{tpu_custom_call.1} parent=15 // pred_fallthru
          _
      $region16: #{tpu_custom_call.1} parent=5 // pred_fallthru
        _
      %p152 = scmp.le.s32.totalorder 1, %s14
      %p153 = scmp.lt.s32.totalorder %s14, 3
      %p154 = pnand %p152, %p153
      %p155 = pneg %p154
      // Predicated region
      $region25: #{tpu_custom_call.1} parent=5 // pred_check
        _
      $region26: #{tpu_custom_call.1} parent=5 // pred_check_branch
        %157 = sbr.rel (%p154) target = $region28
      $region27: #{tpu_custom_call.1} parent=5 // pred_region
        %s158 = ssub.s32 %s14, 1
        %s159 = sand.u32 %s67, 1
        %s160 = scalar_lea.sflag [#allocation3], %s159
        %s161 = sand.u32 %s67, 1
        %s162 = smul.addr %s161, 8
        %s163 = scalar_lea.vmem [#allocation2], %s162
        // Predicated region
        $region29: #{tpu_custom_call.1} parent=27 // pred_check
          %p164 = pneg %p80
        $region30: #{tpu_custom_call.1} parent=27 // pred_check_branch
          %166 = sbr.rel (%p164) target = $region32
        $region31: #{tpu_custom_call.1} parent=27 // pred_region
          %167 = dma.done %s160, 128
        $region32: #{tpu_custom_call.1} parent=27 // pred_fallthru
          _
        %p168 = scmp.lt.s32.totalorder %s23, 1
        %s169 = scalar_select %p168, %s23, 1
        %s170 = scalar_lea.vmem %s0, %s169
        %p171 = pneg %p52
        %p172 = pneg %p49
        %s173 = sand.u32 %s67, 1
        %s174 = scalar_lea.sflag [#allocation3], %s173
        %s175 = sand.u32 %s67, 1
        %s176 = smul.addr %s175, 8
        %s177 = scalar_lea.vmem [#allocation2], %s176
        %p178 = pneg %p80
        %p179 = pneg %p77
        %p180 = pneg %p108
        %p181 = pneg %p105
        %s182 = sand.u32 %s95, 1
        %s183 = scalar_lea.sflag [#allocation4], %s182
        %s184 = sand.u32 %s95, 1
        %s185 = smul.addr %s184, 8
        %s186 = scalar_lea.vmem [#allocation5], %s185
        %p187 = scmp.lt.s32.totalorder %s23, 1
        %s188 = scalar_select %p187, %s23, 1
        %s189 = scalar_lea.vmem %s0, %s188
        %v190 = vld [vmem:[%s163] sm:$0xff]
        %v191 = vld [vmem:[%s189] sm:$0x1]
        %v193 = vlaneseq
        %v194 = vshrl.u32 %v193, 7
        %v195 = vsub.s32 0, %v194
        %v196 = vrot.slane %v191, %v195
        %v198 = vmul.f32 %v190, %v196
        %199 = vst [vmem:[%s186] sm:$0xff] %v198
        %s200 = sand.u32 %s95, 1
        %s201 = scalar_lea.sflag [#allocation4], %s200
        %s202 = sand.u32 %s95, 1
        %s203 = smul.addr %s202, 8
        %s204 = scalar_lea.vmem [#allocation5], %s203
        // Predicated region
        $region33: #{tpu_custom_call.1} parent=27 // pred_check
          %p205 = pneg %p105
        $region34: #{tpu_custom_call.1} parent=27 // pred_check_branch
          %207 = sbr.rel (%p205) target = $region36
        $region35: #{tpu_custom_call.1} parent=27 // pred_region
          %s209 = ssub.s32 128, 128
          %210 = vsyncadd %s201, %s209
          %s211 = sadd.s32 %s24, %s23
          %s212 = smul.addr %s211, 128
          %s213 = scalar_lea.hbm %s2, %s212
          %s215 = sshll.u32 %s204, 4
          %s216 = int_to_ptr.vmem [resolvable:$true] %s215
          %218 = dma.vmem_to_hbm [thread:$0]  %s216, 128, %s213, %s201
        $region36: #{tpu_custom_call.1} parent=27 // pred_fallthru
          _
      $region28: #{tpu_custom_call.1} parent=5 // pred_fallthru
        _
      %p219 = scmp.le.s32.totalorder 2, %s14
      // Predicated region
      $region37: #{tpu_custom_call.1} parent=5 // pred_check
        %p220 = pneg %p219
      $region38: #{tpu_custom_call.1} parent=5 // pred_check_branch
        %222 = sbr.rel (%p220) target = $region40
      $region39: #{tpu_custom_call.1} parent=5 // pred_region
        %s223 = ssub.s32 %s14, 2
        // Predicated region
        $region41: #{tpu_custom_call.1} parent=39 // pred_check
          %p224 = pneg %p111
        $region42: #{tpu_custom_call.1} parent=39 // pred_check_branch
          %226 = sbr.rel (%p224) target = $region44
        $region43: #{tpu_custom_call.1} parent=39 // pred_region
          %s227 = sand.u32 %s96, 1
          %s228 = scalar_lea.sflag [#allocation4], %s227
          %s229 = sand.u32 %s96, 1
          %s230 = smul.addr %s229, 8
          %s231 = scalar_lea.vmem [#allocation5], %s230
          %232 = dma.done %s228, 128
        $region44: #{tpu_custom_call.1} parent=39 // pred_fallthru
          _
      $region40: #{tpu_custom_call.1} parent=5 // pred_fallthru
        _
    $region6: #{tpu_custom_call.1} parent=1 // loop_footer
      %s18 = sadd.s32 1, %s14
    $region7: #{tpu_custom_call.1} parent=1 // loop_footer_branch
      %13 = sbr.rel target = $region3
    $region8: #{tpu_custom_call.1} parent=1 // loop_exit
      _
    %233 = vsyncpa [#allocation3], 1
    %s234 = scalar_lea.sflag [#allocation3], 1
    %235 = vsyncpa %s234, 1
    %236 = vsyncpa [#allocation4], 1
    %s237 = scalar_lea.sflag [#allocation4], 1
    %238 = vsyncpa %s237, 1

</llo_original>
